<compile_context>
chip_gen: v5e
topology: v5e:2x2
jax: 0.10.0
libtpu: 0.0.40
codegen_flags: <defaults>
</compile_context>

<pallas_src>
import jax
import jax.numpy as jnp
from jax.experimental import pallas as pl
from jax.experimental.pallas import tpu as pltpu


def _encdec_kernel(x_ref, noise_ref, w_enc_ref, b_enc_ref,
                   w_fc1_ref, b_fc1_ref, w_fc3_ref, b_fc3_ref,
                   bottleneck_ref, recon_ref):
    # --- encoder: Linear(input_dim -> bottleneck_dim), MXU, f32 accumulate ---
    bottleneck = jnp.dot(x_ref[...], w_enc_ref[...],
                         preferred_element_type=jnp.float32) + b_enc_ref[...]
    bottleneck_ref[...] = bottleneck.astype(bottleneck_ref.dtype)

    # --- additive Gaussian noise (randn_like * noise_variance), f32 so the
    #     ~5e-3-std perturbation is not quantized away ---
    noisy = bottleneck + noise_ref[...]

    # --- decoder fc1 + ELU(alpha=1) ---
    h = jnp.dot(noisy, w_fc1_ref[...],
                preferred_element_type=jnp.float32) + b_fc1_ref[...]
    # TODO(synk): jnp.expm1 would be marginally more accurate near 0, but its
    # Mosaic lowering is not guaranteed; exp(min(h,0))-1 matches torch's ELU.
    h = jnp.where(h > 0.0, h, jnp.exp(jnp.minimum(h, 0.0)) - 1.0)

    # --- decoder fc3 (mean) ---
    mean = jnp.dot(h, w_fc3_ref[...],
                   preferred_element_type=jnp.float32) + b_fc3_ref[...]
    recon_ref[...] = mean.astype(recon_ref.dtype)


def _cdiv(a, b):
    return -(-a // b)


def _round_up(n, m):
    return _cdiv(n, m) * m


def prepare_params(params, *, use_bf16_matmul=True):
    """One-time prep (do NOT call per forward): reshape biases to (1, n) and
    cast the encoder weight to bf16 (MXU fast path).  fc1/fc3 stay f32 so the
    injected noise survives the decoder matmuls."""
    mm = jnp.bfloat16 if use_bf16_matmul else jnp.float32
    return {
        "w_enc": params["w_enc"].astype(mm),
        "b_enc": params["b_enc"].reshape(1, -1).astype(jnp.float32),
        "w_fc1": params["w_fc1"].astype(jnp.float32),
        "b_fc1": params["b_fc1"].reshape(1, -1).astype(jnp.float32),
        "w_fc3": params["w_fc3"].astype(jnp.float32),
        "b_fc3": params["b_fc3"].reshape(1, -1).astype(jnp.float32),
    }


def encoder_decoder_forward(x, prepared, key, *, noise_variance=0.005,
                            tile_m=1024, min_grid_steps=2):
    """x: [B, input_dim] f32.  Returns (bottleneck [B, bn], reconstructed [B, out])."""
    B, input_dim = x.shape
    w_enc, b_enc = prepared["w_enc"], prepared["b_enc"]
    w_fc1, b_fc1 = prepared["w_fc1"], prepared["b_fc1"]
    w_fc3, b_fc3 = prepared["w_fc3"], prepared["b_fc3"]
    bottleneck_dim = w_enc.shape[1]
    output_dim = w_fc3.shape[1]

    # noise = randn_like(bottleneck) * noise_variance.  Generated here (the TPU
    # stateful PRNG has no interpret-mode lowering); this stream is tiny.
    noise = (jax.random.normal(key, (B, bottleneck_dim), jnp.float32)
             * jnp.float32(noise_variance))

    # Ship x in the encoder-weight dtype (bf16 halves the dominant HBM read);
    # elementwise math stays f32 inside the kernel.
    x = x.astype(w_enc.dtype)

    # Balanced batch tiles, multiple-of-8 sublanes, >=2 grid steps when B
    # allows it (v7x has 2 TensorCores).  Row padding is bounded and small.
    n_tiles = _cdiv(B, tile_m)
    if B >= 8 * min_grid_steps:
        n_tiles = max(n_tiles, min_grid_steps)
    tm = _round_up(_cdiv(B, n_tiles), 8)
    n_tiles = _cdiv(B, tm)
    b_pad = tm * n_tiles
    if b_pad != B:
        x = jnp.pad(x, ((0, b_pad - B), (0, 0)))
        noise = jnp.pad(noise, ((0, b_pad - B), (0, 0)))

    def row_spec(cols):       # tiled along batch
        return pl.BlockSpec((tm, cols), lambda i: (i, 0))

    def fixed_spec(shape):    # same block every step -> stays VMEM-resident
        return pl.BlockSpec(shape, lambda i: (0, 0))

    bn_out, rec_out = pl.pallas_call(
        _encdec_kernel,
        out_shape=(jax.ShapeDtypeStruct((b_pad, bottleneck_dim), jnp.float32),
                   jax.ShapeDtypeStruct((b_pad, output_dim), jnp.float32)),
        grid_spec=pltpu.PrefetchScalarGridSpec(
            num_scalar_prefetch=0,
            grid=(n_tiles,),
            in_specs=[
                row_spec(input_dim),
                row_spec(bottleneck_dim),
                fixed_spec(w_enc.shape), fixed_spec(b_enc.shape),
                fixed_spec(w_fc1.shape), fixed_spec(b_fc1.shape),
                fixed_spec(w_fc3.shape), fixed_spec(b_fc3.shape),
            ],
            out_specs=[row_spec(bottleneck_dim), row_spec(output_dim)],
        ),
        compiler_params=pltpu.CompilerParams(
            dimension_semantics=("parallel",),
            vmem_limit_bytes=32 * 1024 * 1024,
        ),
    )(x, noise, w_enc, b_enc, w_fc1, b_fc1, w_fc3, b_fc3)

    if b_pad != B:
        bn_out, rec_out = bn_out[:B], rec_out[:B]
    return bn_out, rec_out


def init_params(key, input_dim, bottleneck_dim, output_dim, hidden_dim=256):
    """Parameter init mirroring the PyTorch module's shapes.

    Weights are stored as (in, out) (transposed vs. torch's (out, in)).
    Decoder fc1/fc3 weights use uniform(-0.005, 0.005) as in the module.
    """
    k = jax.random.split(key, 6)
    bound_enc = 1.0 / jnp.sqrt(input_dim)
    bound_fc1b = 1.0 / jnp.sqrt(bottleneck_dim)
    bound_fc3b = 1.0 / jnp.sqrt(hidden_dim)
    return {
        "w_enc": jax.random.uniform(k[0], (input_dim, bottleneck_dim),
                                    jnp.float32, -bound_enc, bound_enc),
        "b_enc": jax.random.uniform(k[1], (bottleneck_dim,),
                                    jnp.float32, -bound_enc, bound_enc),
        "w_fc1": jax.random.uniform(k[2], (bottleneck_dim, hidden_dim),
                                    jnp.float32, -0.005, 0.005),
        "b_fc1": jax.random.uniform(k[3], (hidden_dim,),
                                    jnp.float32, -bound_fc1b, bound_fc1b),
        "w_fc3": jax.random.uniform(k[4], (hidden_dim, output_dim),
                                    jnp.float32, -0.005, 0.005),
        "b_fc3": jax.random.uniform(k[5], (output_dim,),
                                    jnp.float32, -bound_fc3b, bound_fc3b),
    }


if __name__ == "__main__":
    # small shapes consistent with the module's forward
    B, INPUT_DIM, BOTTLENECK_DIM, OUTPUT_DIM = 8, 32, 8, 32
    NOISE_VARIANCE = 0.005

    root = jax.random.PRNGKey(0)
    k_x, k_p, k_n = jax.random.split(root, 3)

    x = jax.random.normal(k_x, (B, INPUT_DIM), jnp.float32)
    params = init_params(k_p, INPUT_DIM, BOTTLENECK_DIM, OUTPUT_DIM)
    prepared = prepare_params(params, use_bf16_matmul=True)

    bottleneck, reconstructed = encoder_decoder_forward(
        x, prepared, k_n, noise_variance=NOISE_VARIANCE)
    jax.block_until_ready((bottleneck, reconstructed))

    # --- pure-JAX reference with the SAME noise and same precision policy ---
    noise_ref = (jax.random.normal(k_n, (B, BOTTLENECK_DIM), jnp.float32)
                 * jnp.float32(NOISE_VARIANCE))
    ref_bn = jnp.dot(x.astype(prepared["w_enc"].dtype), prepared["w_enc"],
                     preferred_element_type=jnp.float32) + prepared["b_enc"]
    noisy_ref = ref_bn + noise_ref
    h_ref = jnp.dot(noisy_ref, prepared["w_fc1"],
                    preferred_element_type=jnp.float32) + prepared["b_fc1"]
    h_ref = jnp.where(h_ref > 0.0, h_ref, jnp.exp(jnp.minimum(h_ref, 0.0)) - 1.0)
    ref_rec = jnp.dot(h_ref, prepared["w_fc3"],
                      preferred_element_type=jnp.float32) + prepared["b_fc3"]

    assert bottleneck.shape == (B, BOTTLENECK_DIM)
    assert reconstructed.shape == (B, OUTPUT_DIM)
    assert bool(jnp.all(jnp.isfinite(bottleneck)))
    assert bool(jnp.all(jnp.isfinite(reconstructed)))
    assert jnp.allclose(bottleneck, ref_bn, atol=1e-4, rtol=1e-4)
    assert jnp.allclose(reconstructed, ref_rec, atol=1e-4, rtol=1e-3)

    print("KERNEL_OK")
</pallas_src>

<mosaic_0001>
module attributes {stable_mosaic.version = 11 : i64} {
  func.func @_encdec_kernel(%arg0: i32, %arg1: memref<8x32xbf16, #tpu.memory_space<vmem>>, %arg2: memref<8x8xf32, #tpu.memory_space<vmem>>, %arg3: memref<32x8xbf16, #tpu.memory_space<vmem>>, %arg4: memref<1x8xf32, #tpu.memory_space<vmem>>, %arg5: memref<8x256xf32, #tpu.memory_space<vmem>>, %arg6: memref<1x256xf32, #tpu.memory_space<vmem>>, %arg7: memref<256x32xf32, #tpu.memory_space<vmem>>, %arg8: memref<1x32xf32, #tpu.memory_space<vmem>>, %arg9: memref<8x8xf32, #tpu.memory_space<vmem>>, %arg10: memref<8x32xf32, #tpu.memory_space<vmem>>) attributes {dimension_semantics = [#tpu.dimension_semantics<parallel>], iteration_bounds = array<i64: 1>, scalar_prefetch = 0 : i64, scratch_operands = 0 : i64, tpu.core_type = #tpu.core_type<tc>, window_params = [{transform_indices = @transform_0, window_bounds = array<i64: 8, 32>}, {transform_indices = @transform_1, window_bounds = array<i64: 8, 8>}, {pipeline_mode = #tpu.pipeline_mode<synchronous>, transform_indices = @transform_2, window_bounds = array<i64: 32, 8>}, {pipeline_mode = #tpu.pipeline_mode<synchronous>, transform_indices = @transform_3, window_bounds = array<i64: 1, 8>}, {pipeline_mode = #tpu.pipeline_mode<synchronous>, transform_indices = @transform_4, window_bounds = array<i64: 8, 256>}, {pipeline_mode = #tpu.pipeline_mode<synchronous>, transform_indices = @transform_5, window_bounds = array<i64: 1, 256>}, {pipeline_mode = #tpu.pipeline_mode<synchronous>, transform_indices = @transform_6, window_bounds = array<i64: 256, 32>}, {pipeline_mode = #tpu.pipeline_mode<synchronous>, transform_indices = @transform_7, window_bounds = array<i64: 1, 32>}, {transform_indices = @transform_8, window_bounds = array<i64: 8, 8>}, {transform_indices = @transform_9, window_bounds = array<i64: 8, 32>}]} {
    %c0 = arith.constant 0 : index
    %c0_0 = arith.constant 0 : index
    %0 = vector.load %arg1[%c0, %c0_0] : memref<8x32xbf16, #tpu.memory_space<vmem>>, vector<8x32xbf16>
    %c0_1 = arith.constant 0 : index
    %c0_2 = arith.constant 0 : index
    %1 = vector.load %arg3[%c0_1, %c0_2] : memref<32x8xbf16, #tpu.memory_space<vmem>>, vector<32x8xbf16>
    %cst = arith.constant dense<0.000000e+00> : vector<8x8xf32>
    %2 = tpu.matmul %0, %1, %cst {dimension_numbers = #tpu.dot_dimension_numbers<[1], [0], [0], [1], [0, 0, 1, 1], [], []>} : vector<8x32xbf16>, vector<32x8xbf16>, vector<8x8xf32> -> vector<8x8xf32>
    %c0_3 = arith.constant 0 : index
    %c0_4 = arith.constant 0 : index
    %3 = vector.load %arg4[%c0_3, %c0_4] : memref<1x8xf32, #tpu.memory_space<vmem>>, vector<1x8xf32>
    %4 = vector.broadcast %3 : vector<1x8xf32> to vector<8x8xf32>
    %5 = arith.addf %2, %4 : vector<8x8xf32>
    %c0_5 = arith.constant 0 : index
    %c0_6 = arith.constant 0 : index
    %6 = vector.load %arg9[%c0_5, %c0_6] : memref<8x8xf32, #tpu.memory_space<vmem>>, vector<8x8xf32>
    tpu.vector_store %arg9[%c0_5, %c0_6], %5 {strides = array<i32>} : memref<8x8xf32, #tpu.memory_space<vmem>>, vector<8x8xf32>,
    %c0_7 = arith.constant 0 : index
    %c0_8 = arith.constant 0 : index
    %7 = vector.load %arg2[%c0_7, %c0_8] : memref<8x8xf32, #tpu.memory_space<vmem>>, vector<8x8xf32>
    %8 = arith.addf %5, %7 : vector<8x8xf32>
    %c0_9 = arith.constant 0 : index
    %c0_10 = arith.constant 0 : index
    %9 = vector.load %arg5[%c0_9, %c0_10] : memref<8x256xf32, #tpu.memory_space<vmem>>, vector<8x256xf32>
    %cst_11 = arith.constant dense<0.000000e+00> : vector<8x256xf32>
    %10 = tpu.matmul %8, %9, %cst_11 {dimension_numbers = #tpu.dot_dimension_numbers<[1], [0], [0], [1], [0, 0, 1, 1], [], []>} : vector<8x8xf32>, vector<8x256xf32>, vector<8x256xf32> -> vector<8x256xf32>
    %c0_12 = arith.constant 0 : index
    %c0_13 = arith.constant 0 : index
    %11 = vector.load %arg6[%c0_12, %c0_13] : memref<1x256xf32, #tpu.memory_space<vmem>>, vector<1x256xf32>
    %12 = vector.broadcast %11 : vector<1x256xf32> to vector<8x256xf32>
    %13 = arith.addf %10, %12 : vector<8x256xf32>
    %cst_14 = arith.constant 0.000000e+00 : f32
    %14 = vector.broadcast %cst_14 : f32 to vector<8x256xf32>
    %15 = arith.cmpf ogt, %13, %14 : vector<8x256xf32>
    %cst_15 = arith.constant 0.000000e+00 : f32
    %16 = vector.broadcast %cst_15 : f32 to vector<8x256xf32>
    %17 = arith.minimumf %13, %16 : vector<8x256xf32>
    %18 = math.exp %17 : vector<8x256xf32>
    %cst_16 = arith.constant 1.000000e+00 : f32
    %19 = vector.broadcast %cst_16 : f32 to vector<8x256xf32>
    %20 = arith.subf %18, %19 : vector<8x256xf32>
    %21 = arith.select %15, %13, %20 : vector<8x256xi1>, vector<8x256xf32>
    %c0_17 = arith.constant 0 : index
    %c0_18 = arith.constant 0 : index
    %22 = vector.load %arg7[%c0_17, %c0_18] : memref<256x32xf32, #tpu.memory_space<vmem>>, vector<256x32xf32>
    %cst_19 = arith.constant dense<0.000000e+00> : vector<8x32xf32>
    %23 = tpu.matmul %21, %22, %cst_19 {dimension_numbers = #tpu.dot_dimension_numbers<[1], [0], [0], [1], [0, 0, 1, 1], [], []>} : vector<8x256xf32>, vector<256x32xf32>, vector<8x32xf32> -> vector<8x32xf32>
    %c0_20 = arith.constant 0 : index
    %c0_21 = arith.constant 0 : index
    %24 = vector.load %arg8[%c0_20, %c0_21] : memref<1x32xf32, #tpu.memory_space<vmem>>, vector<1x32xf32>
    %25 = vector.broadcast %24 : vector<1x32xf32> to vector<8x32xf32>
    %26 = arith.addf %23, %25 : vector<8x32xf32>
    %c0_22 = arith.constant 0 : index
    %c0_23 = arith.constant 0 : index
    %27 = vector.load %arg10[%c0_22, %c0_23] : memref<8x32xf32, #tpu.memory_space<vmem>>, vector<8x32xf32>
    tpu.vector_store %arg10[%c0_22, %c0_23], %26 {strides = array<i32>} : memref<8x32xf32, #tpu.memory_space<vmem>>, vector<8x32xf32>,
    return
  }
  func.func @transform_0(%arg0: i32) -> (i32, i32) {
    %c0_i32 = arith.constant 0 : i32
    %c0_i32_0 = arith.constant 0 : i32
    return %arg0, %c0_i32 : i32, i32
  }
  func.func @transform_1(%arg0: i32) -> (i32, i32) {
    %c0_i32 = arith.constant 0 : i32
    %c0_i32_0 = arith.constant 0 : i32
    return %arg0, %c0_i32 : i32, i32
  }
  func.func @transform_2(%arg0: i32) -> (i32, i32) {
    %c0_i32 = arith.constant 0 : i32
    %c0_i32_0 = arith.constant 0 : i32
    %c0_i32_1 = arith.constant 0 : i32
    return %c0_i32, %c0_i32_0 : i32, i32
  }
  func.func @transform_3(%arg0: i32) -> (i32, i32) {
    %c0_i32 = arith.constant 0 : i32
    %c0_i32_0 = arith.constant 0 : i32
    %c0_i32_1 = arith.constant 0 : i32
    return %c0_i32, %c0_i32_0 : i32, i32
  }
  func.func @transform_4(%arg0: i32) -> (i32, i32) {
    %c0_i32 = arith.constant 0 : i32
    %c0_i32_0 = arith.constant 0 : i32
    %c0_i32_1 = arith.constant 0 : i32
    return %c0_i32, %c0_i32_0 : i32, i32
  }
  func.func @transform_5(%arg0: i32) -> (i32, i32) {
    %c0_i32 = arith.constant 0 : i32
    %c0_i32_0 = arith.constant 0 : i32
    %c0_i32_1 = arith.constant 0 : i32
    return %c0_i32, %c0_i32_0 : i32, i32
  }
  func.func @transform_6(%arg0: i32) -> (i32, i32) {
    %c0_i32 = arith.constant 0 : i32
    %c0_i32_0 = arith.constant 0 : i32
    %c0_i32_1 = arith.constant 0 : i32
    return %c0_i32, %c0_i32_0 : i32, i32
  }
  func.func @transform_7(%arg0: i32) -> (i32, i32) {
    %c0_i32 = arith.constant 0 : i32
    %c0_i32_0 = arith.constant 0 : i32
    %c0_i32_1 = arith.constant 0 : i32
    return %c0_i32, %c0_i32_0 : i32, i32
  }
  func.func @transform_8(%arg0: i32) -> (i32, i32) {
    %c0_i32 = arith.constant 0 : i32
    %c0_i32_0 = arith.constant 0 : i32
    return %arg0, %c0_i32 : i32, i32
  }
  func.func @transform_9(%arg0: i32) -> (i32, i32) {
    %c0_i32 = arith.constant 0 : i32
    %c0_i32_0 = arith.constant 0 : i32
    return %arg0, %c0_i32 : i32, i32
  }
}

</mosaic_0001>

<llo_original>
// kernel: tpu_custom_call.1
$region0: #{tpu_custom_call.1}
  #allocation0 [shape = 'u32[]', space=smem, size = 0x4, offset = 0x4, fixed_abs, tag = 'smem constant byte address 0x4 - core index']
  #allocation1 [shape = 'u32[72,128]{1,0:T(1,128)}', space=vmem, size = 0x9000, scoped, tag = 'internal scratch']
  %s0 = inlined_call_operand.vmem [shape: bf16[8,32], index: 0, kind: input, shape index: {}]
  %s1 = inlined_call_operand.vmem [shape: f32[8,8], index: 1, kind: input, shape index: {}]
  %s2 = inlined_call_operand.vmem [shape: bf16[32,8], index: 2, kind: input, shape index: {}]
  %s3 = inlined_call_operand.vmem [shape: f32[1,8], index: 3, kind: input, shape index: {}]
  %s4 = inlined_call_operand.vmem [shape: f32[8,256], index: 4, kind: input, shape index: {}]
  %s5 = inlined_call_operand.vmem [shape: f32[1,256], index: 5, kind: input, shape index: {}]
  %s6 = inlined_call_operand.vmem [shape: f32[256,32], index: 6, kind: input, shape index: {}]
  %s7 = inlined_call_operand.vmem [shape: f32[1,32], index: 7, kind: input, shape index: {}]
  %s8 = inlined_call_operand.hbm [shape: f32[8,8], index: 8, kind: output, shape index: {0}]
  %s9 = inlined_call_operand.hbm [shape: f32[8,32], index: 9, kind: output, shape index: {1}]
  %10 = xla_tuple %s8, %s9
  %s11 = sld [smem:[#allocation0]]
  $region50: #{tpu_custom_call.1} parent=0
    _
  %s13 = ssub.s32 1, %s11
  %s14 = scalar_select 0, %s13, %s11
  $region1: #{tpu_custom_call.1} parent=0
    #allocation2 [shape = 'u8[4096]{0}', space=vmem, size = 0x1000, scoped, tag = 'output window, operand 0, single buffered']
    #allocation3 [shape = 's32[1]{0}', space=sflag, size = 0x4, scoped, tag = 'scoped memory for tpu_custom_call.1']
    #allocation4 [shape = 'u8[4096]{0}', space=vmem, size = 0x1000, scoped, tag = 'output window, operand 1, single buffered']
    #allocation5 [shape = 's32[1]{0}', space=sflag, size = 0x4, scoped, tag = 'scoped memory for tpu_custom_call.1']
    %15 = vsyncpa [#allocation3], 0
    %16 = vsyncpa [#allocation5], 0
    // Predicated region
    $region2: #{tpu_custom_call.1} parent=1 // pred_check
      _
    $region3: #{tpu_custom_call.1} parent=1 // pred_check_branch
      %18 = sbr.rel (0) target = $region5
    $region4: #{tpu_custom_call.1} parent=1 // pred_region
      _
    $region5: #{tpu_custom_call.1} parent=1 // pred_fallthru
      _
    // Predicated region
    $region6: #{tpu_custom_call.1} parent=1 // pred_check
      _
    $region7: #{tpu_custom_call.1} parent=1 // pred_check_branch
      %20 = sbr.rel (0) target = $region9
    $region8: #{tpu_custom_call.1} parent=1 // pred_region
      _
    $region9: #{tpu_custom_call.1} parent=1 // pred_fallthru
      _
    // Predicated region
    $region10: #{tpu_custom_call.1} parent=1 // pred_check
      _
    $region11: #{tpu_custom_call.1} parent=1 // pred_check_branch
      %22 = sbr.rel (0) target = $region13
    $region12: #{tpu_custom_call.1} parent=1 // pred_region
      _
    $region13: #{tpu_custom_call.1} parent=1 // pred_fallthru
      _
    // Predicated region
    $region14: #{tpu_custom_call.1} parent=1 // pred_check
      _
    $region15: #{tpu_custom_call.1} parent=1 // pred_check_branch
      %24 = sbr.rel (0) target = $region17
    $region16: #{tpu_custom_call.1} parent=1 // pred_region
      _
    $region17: #{tpu_custom_call.1} parent=1 // pred_fallthru
      _
    // Predicated region
    $region18: #{tpu_custom_call.1} parent=1 // pred_check
      _
    $region19: #{tpu_custom_call.1} parent=1 // pred_check_branch
      %26 = sbr.rel (0) target = $region21
    $region20: #{tpu_custom_call.1} parent=1 // pred_region
      _
    $region21: #{tpu_custom_call.1} parent=1 // pred_fallthru
      _
    // Predicated region
    $region22: #{tpu_custom_call.1} parent=1 // pred_check
      _
    $region23: #{tpu_custom_call.1} parent=1 // pred_check_branch
      %28 = sbr.rel (0) target = $region25
    $region24: #{tpu_custom_call.1} parent=1 // pred_region
      _
    $region25: #{tpu_custom_call.1} parent=1 // pred_fallthru
      _
    // Predicated region
    $region26: #{tpu_custom_call.1} parent=1 // pred_check
      _
    $region27: #{tpu_custom_call.1} parent=1 // pred_check_branch
      %30 = sbr.rel (0) target = $region29
    $region28: #{tpu_custom_call.1} parent=1 // pred_region
      _
    $region29: #{tpu_custom_call.1} parent=1 // pred_fallthru
      _
    // Predicated region
    $region30: #{tpu_custom_call.1} parent=1 // pred_check
      _
    $region31: #{tpu_custom_call.1} parent=1 // pred_check_branch
      %32 = sbr.rel (0) target = $region33
    $region32: #{tpu_custom_call.1} parent=1 // pred_region
      _
    $region33: #{tpu_custom_call.1} parent=1 // pred_fallthru
      _
    %v34 = vld [vmem:[%s0] sm:$0xf]
    %v35 = vld [vmem:[%s2] sm:$0xf]
    %v36 = vld [vmem:[%s2 + $0x4] sm:$0xf]
    %v37 = vld [vmem:[%s2 + $0x8] sm:$0xf]
    %v38 = vld [vmem:[%s2 + $0xc] sm:$0xf]
    %v39 = vld [vmem:[%s3] sm:$0x1]
    %v41 = vperm.slane %v39, 0
    %v47 = vunpack.c.l.b16 %v35
    %v48 = vunpack.c.l.b16 %v36
    %v49 = vunpack.c.l.b16 %v37
    %v50 = vunpack.c.l.b16 %v38
    %v51 = vpack.c.b16 %v48, %v47
    %v52 = vpack.c.b16 %v50, %v49
    %vm55 = vcmask 261120
    %v57 = vsel %vm55, %v34, 0
    %59 = vmatpush.bf16.msra.mxu0 0
    %60 = vmatpush.bf16.msra.mxu0 0
    %61 = vmatpush.bf16.msra.mxu0 0
    %62 = vmatpush.bf16.msra.mxu0 0
    %63 = vmatpush.bf16.msra.mxu0 0
    %64 = vmatpush.bf16.msra.mxu0 0
    %65 = vmatpush.bf16.msra.mxu0 %v52
    %66 = vmatpush.bf16.msra.mxu0 %v51
    %67 = vmatmul.bf16.gmra.mxu0 %v57
    %v68 = vpop.f32.mrf.mxu0
    %v69 = vadd.f32 %v41, %v68
    %v70 = vpop.f32.mrf.mxu0
    %71 = vdwg.mxu0
    %vm72 = vcmask 64512
    %73 = vst.msk [vmem:[#allocation2] sm:$0xff] %vm72, %v69
    %v74 = vld [vmem:[%s1] sm:$0xff]
    %v75 = vadd.f32 %v69, %v74
    %v76 = vld [vmem:[%s4] sm:$0xff]
    %v77 = vld [vmem:[%s4 + $0x8] sm:$0xff]
    %v78 = vld [vmem:[%s5] sm:$0x3]
    %v80 = vperm.slane %v78, 0
    %v81 = vperm.slane %v78, 1
    %v85 = vsel %vm72, %v75, 0
    %87 = vmatpush.msra.mxu0 0.0
    %88 = vmatpush.msra.mxu0 0.0
    %89 = vmatpush.msra.mxu0 0.0
    %90 = vmatpush.msra.mxu0 0.0
    %91 = vmatpush.msra.mxu0 0.0
    %92 = vmatpush.msra.mxu0 0.0
    %93 = vmatpush.msra.mxu0 0.0
    %94 = vmatpush.msra.mxu0 0.0
    %95 = vmatpush.msra.mxu0 0.0
    %96 = vmatpush.msra.mxu0 0.0
    %97 = vmatpush.msra.mxu0 0.0
    %98 = vmatpush.msra.mxu0 0.0
    %99 = vmatpush.msra.mxu0 0.0
    %100 = vmatpush.msra.mxu0 0.0
    %101 = vmatpush.msra.mxu0 0.0
    %102 = vmatpush.msra.mxu0 %v76
    %103 = vmatmul.f32.gmra.mxu0 %v85
    %v104 = vpop.f32.mrf.mxu0
    %v105 = vadd.f32 %v80, %v104
    %106 = vdwg.mxu0
    %107 = vmatpush.msra.mxu0 0.0
    %108 = vmatpush.msra.mxu0 0.0
    %109 = vmatpush.msra.mxu0 0.0
    %110 = vmatpush.msra.mxu0 0.0
    %111 = vmatpush.msra.mxu0 0.0
    %112 = vmatpush.msra.mxu0 0.0
    %113 = vmatpush.msra.mxu0 0.0
    %114 = vmatpush.msra.mxu0 0.0
    %115 = vmatpush.msra.mxu0 0.0
    %116 = vmatpush.msra.mxu0 0.0
    %117 = vmatpush.msra.mxu0 0.0
    %118 = vmatpush.msra.mxu0 0.0
    %119 = vmatpush.msra.mxu0 0.0
    %120 = vmatpush.msra.mxu0 0.0
    %121 = vmatpush.msra.mxu0 0.0
    %122 = vmatpush.msra.mxu0 %v77
    %123 = vmatmul.f32.gmra.mxu0 %v85
    %v124 = vpop.f32.mrf.mxu0
    %v125 = vadd.f32 %v81, %v124
    %126 = vdwg.mxu0
    %vm127 = vcmp.gt.f32.partialorder %v105, 0.0
    %vm128 = vcmp.gt.f32.partialorder %v125, 0.0
    %v129 = vmin.f32 %v105, 0.0
    %v130 = vmin.f32 %v125, 0.0
    %v131 = vmul.f32 %v129, 1.442695
    %v132 = vpow.pop %v131
    %v133 = vmul.f32 %v130, 1.442695
    %v134 = vpow.pop %v133
    %v135 = vsub.f32 %v132, 1.0
    %v136 = vsub.f32 %v134, 1.0
    %v137 = vsel %vm127, %v105, %v135
    %v138 = vsel %vm128, %v125, %v136
    %v139 = vld [vmem:[%s6] sm:$0xff]
    %v140 = vld [vmem:[%s6 + $0x8] sm:$0xff]
    %v141 = vld [vmem:[%s6 + $0x10] sm:$0xff]
    %v142 = vld [vmem:[%s6 + $0x18] sm:$0xff]
    %v143 = vld [vmem:[%s6 + $0x20] sm:$0xff]
    %v144 = vld [vmem:[%s6 + $0x28] sm:$0xff]
    %v145 = vld [vmem:[%s6 + $0x30] sm:$0xff]
    %v146 = vld [vmem:[%s6 + $0x38] sm:$0xff]
    %v147 = vld [vmem:[%s6 + $0x40] sm:$0xff]
    %v148 = vld [vmem:[%s6 + $0x48] sm:$0xff]
    %v149 = vld [vmem:[%s6 + $0x50] sm:$0xff]
    %v150 = vld [vmem:[%s6 + $0x58] sm:$0xff]
    %v151 = vld [vmem:[%s6 + $0x60] sm:$0xff]
    %v152 = vld [vmem:[%s6 + $0x68] sm:$0xff]
    %v153 = vld [vmem:[%s6 + $0x70] sm:$0xff]
    %v154 = vld [vmem:[%s6 + $0x78] sm:$0xff]
    %v155 = vld [vmem:[%s6 + $0x80] sm:$0xff]
    %v156 = vld [vmem:[%s6 + $0x88] sm:$0xff]
    %v157 = vld [vmem:[%s6 + $0x90] sm:$0xff]
    %v158 = vld [vmem:[%s6 + $0x98] sm:$0xff]
    %v159 = vld [vmem:[%s6 + $0xa0] sm:$0xff]
    %v160 = vld [vmem:[%s6 + $0xa8] sm:$0xff]
    %v161 = vld [vmem:[%s6 + $0xb0] sm:$0xff]
    %v162 = vld [vmem:[%s6 + $0xb8] sm:$0xff]
    %v163 = vld [vmem:[%s6 + $0xc0] sm:$0xff]
    %v164 = vld [vmem:[%s6 + $0xc8] sm:$0xff]
    %v165 = vld [vmem:[%s6 + $0xd0] sm:$0xff]
    %v166 = vld [vmem:[%s6 + $0xd8] sm:$0xff]
    %v167 = vld [vmem:[%s6 + $0xe0] sm:$0xff]
    %v168 = vld [vmem:[%s6 + $0xe8] sm:$0xff]
    %v169 = vld [vmem:[%s6 + $0xf0] sm:$0xff]
    %v170 = vld [vmem:[%s6 + $0xf8] sm:$0xff]
    %v171 = vld [vmem:[%s7] sm:$0x1]
    %v173 = vperm.slane %v171, 0
    %175 = vmatpush.msra.mxu0 %v154
    %176 = vmatpush.msra.mxu0 %v153
    %177 = vmatpush.msra.mxu0 %v152
    %178 = vmatpush.msra.mxu0 %v151
    %179 = vmatpush.msra.mxu0 %v150
    %180 = vmatpush.msra.mxu0 %v149
    %181 = vmatpush.msra.mxu0 %v148
    %182 = vmatpush.msra.mxu0 %v147
    %183 = vmatpush.msra.mxu0 %v146
    %184 = vmatpush.msra.mxu0 %v145
    %185 = vmatpush.msra.mxu0 %v144
    %186 = vmatpush.msra.mxu0 %v143
    %187 = vmatpush.msra.mxu0 %v142
    %188 = vmatpush.msra.mxu0 %v141
    %189 = vmatpush.msra.mxu0 %v140
    %190 = vmatpush.msra.mxu0 %v139
    %191 = vmatmul.f32.gmra.mxu0 %v137
    %v192 = vpop.f32.mrf.mxu0
    %v193 = vadd.f32 %v173, %v192
    %194 = vdwg.mxu0
    %195 = vmatpush.msra.mxu0 %v170
    %196 = vmatpush.msra.mxu0 %v169
    %197 = vmatpush.msra.mxu0 %v168
    %198 = vmatpush.msra.mxu0 %v167
    %199 = vmatpush.msra.mxu0 %v166
    %200 = vmatpush.msra.mxu0 %v165
    %201 = vmatpush.msra.mxu0 %v164
    %202 = vmatpush.msra.mxu0 %v163
    %203 = vmatpush.msra.mxu0 %v162
    %204 = vmatpush.msra.mxu0 %v161
    %205 = vmatpush.msra.mxu0 %v160
    %206 = vmatpush.msra.mxu0 %v159
    %207 = vmatpush.msra.mxu0 %v158
    %208 = vmatpush.msra.mxu0 %v157
    %209 = vmatpush.msra.mxu0 %v156
    %210 = vmatpush.msra.mxu0 %v155
    %211 = vmatmul.f32.gmra.mxu0 %v138
    %v212 = vpop.f32.mrf.mxu0
    %v213 = vadd.f32 %v193, %v212
    %214 = vdwg.mxu0
    %215 = vst.msk [vmem:[#allocation4] sm:$0xff] %vm55, %v213
    // Predicated region
    $region34: #{tpu_custom_call.1} parent=1 // pred_check
      _
    $region35: #{tpu_custom_call.1} parent=1 // pred_check_branch
      %217 = sbr.rel (0) target = $region37
    $region36: #{tpu_custom_call.1} parent=1 // pred_region
      %219 = vsyncadd [#allocation3], 0
      %s221 = sshll.u32 [#allocation2], 4
      %s222 = int_to_ptr.vmem [resolvable:$true] %s221
      %s223 = sshll.u32 %s8, 4
      %s224 = int_to_ptr.hbm [resolvable:$true] %s223
      %226 = dma.vmem_to_hbm [thread:$0]  %s222, 128, %s224, [#allocation3]
    $region37: #{tpu_custom_call.1} parent=1 // pred_fallthru
      _
    // Predicated region
    $region38: #{tpu_custom_call.1} parent=1 // pred_check
      _
    $region39: #{tpu_custom_call.1} parent=1 // pred_check_branch
      %228 = sbr.rel (0) target = $region41
    $region40: #{tpu_custom_call.1} parent=1 // pred_region
      %230 = vsyncadd [#allocation5], 0
      %s232 = sshll.u32 [#allocation4], 4
      %s233 = int_to_ptr.vmem [resolvable:$true] %s232
      %s234 = sshll.u32 %s9, 4
      %s235 = int_to_ptr.hbm [resolvable:$true] %s234
      %237 = dma.vmem_to_hbm [thread:$0]  %s233, 128, %s235, [#allocation5]
    $region41: #{tpu_custom_call.1} parent=1 // pred_fallthru
      _
    // Predicated region
    $region42: #{tpu_custom_call.1} parent=1 // pred_check
      _
    $region43: #{tpu_custom_call.1} parent=1 // pred_check_branch
      %239 = sbr.rel (0) target = $region45
    $region44: #{tpu_custom_call.1} parent=1 // pred_region
      %241 = dma.done [#allocation3], 128
    $region45: #{tpu_custom_call.1} parent=1 // pred_fallthru
      _
    // Predicated region
    $region46: #{tpu_custom_call.1} parent=1 // pred_check
      _
    $region47: #{tpu_custom_call.1} parent=1 // pred_check_branch
      %243 = sbr.rel (0) target = $region49
    $region48: #{tpu_custom_call.1} parent=1 // pred_region
      %245 = dma.done [#allocation5], 128
    $region49: #{tpu_custom_call.1} parent=1 // pred_fallthru
      _
    %246 = vsyncpa [#allocation3], 1
    %247 = vsyncpa [#allocation5], 1

</llo_original>
